<compile_context>
chip_gen: v5e
topology: v5e:2x2
jax: 0.10.0
libtpu: 0.0.40
codegen_flags: <defaults>
</compile_context>

<pallas_src>
import functools

import jax
import jax.numpy as jnp
from jax.experimental import pallas as pl
from jax.experimental.pallas import tpu as pltpu


# -------------------- fused whole-network kernel --------------------

def _tcn_kernel(x_ref, *rest, K, L, layer_meta, compute_dtype):
    """Entire TCN on one (C, lane_block) activation tile (lane_block = nb * L, whole sequences).

    layer_meta: tuple of (Cout, dilation, has_downsample) per TemporalBlock.
    Weight refs per block, in order: w1 (K*Cout, Cin), b1 (Cout, 1),
    w2 (K*Cout, Cout), b2 (Cout, 1), then optionally wd (Cout, Cin), bd (Cout, 1).
    """
    *w_refs, o_ref = rest
    NL = x_ref.shape[-1]

    # Time index within each sequence, built in-kernel (no HBM stream / DMA / VMEM buffer).
    t = jax.lax.broadcasted_iota(jnp.int32, (1, NL), 1) % L

    # Hoist the per-shift masks: each distinct lookback distance used anywhere in the network
    # is computed exactly once and shared by conv1/conv2 of every layer that needs it.
    masks = {}
    for _c_out, dilation, _has_ds in layer_meta:
        for j in range(1, K):
            s = j * dilation
            if s < L and s not in masks:
                masks[s] = t >= s

    def causal_conv(v, w_ref, b_ref, c_out, dilation):
        # One MXU matmul on the UNshifted activation; the K taps are stacked along the output
        # rows.  Per-tap lane shift (XLU roll) + mask + accumulate on the (c_out, NL) results.
        z = jnp.dot(w_ref[...], v, preferred_element_type=jnp.float32)   # (K*c_out, NL) f32
        acc = z[(K - 1) * c_out:, :]                                     # tap with zero shift
        for k in range(K - 1):
            s = (K - 1 - k) * dilation
            if s >= L:
                continue          # lookback never lands inside the sequence -> contributes 0
            zk = pltpu.roll(z[k * c_out:(k + 1) * c_out, :], shift=s, axis=1)
            acc = acc + jnp.where(masks[s], zk, 0.0)   # (1, NL) mask broadcasts over sublanes
        return acc + b_ref[...]                                          # bias over lanes

    # Activation / residual chain stays f32 on-chip; only MXU operands are compute_dtype.
    a = x_ref[...].astype(jnp.float32)
    idx = 0
    for c_out, dilation, has_ds in layer_meta:
        w1, b1, w2, b2 = w_refs[idx], w_refs[idx + 1], w_refs[idx + 2], w_refs[idx + 3]
        idx += 4
        a_cd = a.astype(compute_dtype)
        # conv1 + chomp + relu (+dropout = identity)
        h = jnp.maximum(causal_conv(a_cd, w1, b1, c_out, dilation), 0.0)
        # conv2 + chomp + relu (+dropout = identity)
        g = jnp.maximum(causal_conv(h.astype(compute_dtype), w2, b2, c_out, dilation), 0.0)
        # residual path: resident f32 activation or 1x1 downsample conv
        if has_ds:
            wd, bd = w_refs[idx], w_refs[idx + 1]
            idx += 2
            res = jnp.dot(wd[...], a_cd, preferred_element_type=jnp.float32) + bd[...]
        else:
            res = a
        a = jnp.maximum(g + res, 0.0)                                    # block output (f32)
    o_ref[...] = a.astype(o_ref.dtype)


# -------------------- tiling heuristics & wrapper --------------------

def _pick_batch_tile(N, L, per_lane_bytes, *, vmem_budget=24 << 20,
                     target_lanes=1024, min_steps=4):
    """Batch-tile size nb (nb | N).  Prefers >= min_steps grid steps (double-buffered
    pipelining and work for both v7x TensorCores), a 128-divisible lane block of
    >= target_lanes, and a per-step working set within the VMEM budget.  Tiny problems
    fall back to one full-array step."""
    if N * L < 256:
        return N
    cands = [nb for nb in range(1, N + 1)
             if N % nb == 0 and (nb * L) % 128 == 0
             and nb * L * per_lane_bytes <= vmem_budget]
    if not cands:
        return N                          # block == full array is always legal
    for want_steps in (min_steps, 2):
        ok = [nb for nb in cands if N // nb >= want_steps]
        if ok:
            dense = [nb for nb in ok if nb * L >= target_lanes]
            # smallest lane-dense tile -> most grid steps while staying >= target_lanes
            return min(dense) if dense else max(ok)
    return max(cands)


def temporal_conv_net(x, all_params, kernel_size, *, compute_dtype=jnp.float32):
    """TemporalConvNet.forward. x: (N, C0, L) -> (N, C_last, L).

    all_params: list of (w1 (K,Cout,Cin), b1 (Cout,1), w2 (K,Cout,Cout), b2 (Cout,1),
                         wd (1,Cout,Cin) or None, bd (Cout,1) or None), one per TemporalBlock.
    compute_dtype=bfloat16 runs MXU operands in bf16 (recommended on v5e); the activation /
    residual chain and accumulation stay f32 inside the kernel.
    """
    N, C0, L = x.shape
    K = kernel_size

    channel_sizes = [C0] + [p[0].shape[1] for p in all_params]
    C_last = channel_sizes[-1]
    C_max = max(channel_sizes)
    itemsize = jnp.dtype(x.dtype).itemsize
    # Rough per-lane VMEM footprint: double-buffered x / out blocks + f32 in-kernel working set.
    per_lane_bytes = 2 * C0 * itemsize + 2 * C_last * itemsize + (K + 4) * C_max * 4
    nb = _pick_batch_tile(N, L, per_lane_bytes)
    lane_block = nb * L
    grid = (N // nb,)

    # One layout change for the whole network: channel-major, batch folded into the lane axis.
    a = jnp.transpose(x, (1, 0, 2)).reshape(C0, N * L)

    in_specs = [pl.BlockSpec((C0, lane_block), lambda i: (0, i))]        # x tile (pipelined)
    flat_args = [a]
    layer_meta = []
    c_in = C0
    for li, (w1, b1, w2, b2, wd, bd) in enumerate(all_params):
        c_out = w1.shape[1]
        has_ds = wd is not None
        layer_meta.append((c_out, 2 ** li, has_ds))
        # (K, Cout, Cin) -> (K*Cout, Cin): taps stacked along output rows -> one matmul per conv.
        flat_args += [w1.reshape(K * c_out, c_in).astype(compute_dtype),
                      b1.astype(jnp.float32),
                      w2.reshape(K * c_out, c_out).astype(compute_dtype),
                      b2.astype(jnp.float32)]
        # Constant-index weight blocks (single-buffering them via pipeline_mode is possible but
        # unnecessary at these sizes — they are a few KiB total).
        in_specs += [pl.BlockSpec((K * c_out, c_in), lambda i: (0, 0)),
                     pl.BlockSpec((c_out, 1), lambda i: (0, 0)),
                     pl.BlockSpec((K * c_out, c_out), lambda i: (0, 0)),
                     pl.BlockSpec((c_out, 1), lambda i: (0, 0))]
        if has_ds:
            flat_args += [wd.reshape(c_out, c_in).astype(compute_dtype),
                          bd.astype(jnp.float32)]
            in_specs += [pl.BlockSpec((c_out, c_in), lambda i: (0, 0)),
                         pl.BlockSpec((c_out, 1), lambda i: (0, 0))]
        c_in = c_out

    kernel = functools.partial(_tcn_kernel, K=K, L=L, layer_meta=tuple(layer_meta),
                               compute_dtype=compute_dtype)
    out_flat = pl.pallas_call(
        kernel,
        out_shape=jax.ShapeDtypeStruct((C_last, N * L), x.dtype),
        grid_spec=pltpu.PrefetchScalarGridSpec(
            num_scalar_prefetch=0,
            grid=grid,
            in_specs=in_specs,
            out_specs=pl.BlockSpec((C_last, lane_block), lambda i: (0, i)),
        ),
        compiler_params=pltpu.CompilerParams(
            dimension_semantics=("parallel",),
            # Above the 16/32 MiB scoped defaults, below v7x's 64 MiB physical VMEM; the tile
            # picker already budgets the per-step working set to ~24 MiB.
            vmem_limit_bytes=48 * 1024 * 1024,
        ),
    )(*flat_args)

    return jnp.transpose(out_flat.reshape(C_last, N, L), (1, 0, 2))


# -------------------- pure-JAX reference for validation --------------------

def _conv_ref(x, w, b, dilation):
    w_oih = jnp.transpose(w, (1, 2, 0))  # (Cout, Cin, K)
    pad = (w.shape[0] - 1) * dilation
    y = jax.lax.conv_general_dilated(
        x, w_oih, window_strides=(1,), padding=[(pad, 0)],
        rhs_dilation=(dilation,), dimension_numbers=("NCH", "OIH", "NCH"),
        precision=jax.lax.Precision.HIGHEST)
    return y + b[None]


def tcn_ref(x, all_params):
    out = x
    for i, (w1, b1, w2, b2, wd, bd) in enumerate(all_params):
        d = 2 ** i
        h = jax.nn.relu(_conv_ref(out, w1, b1, d))
        h = jax.nn.relu(_conv_ref(h, w2, b2, d))
        res = out if wd is None else _conv_ref(out, wd, bd, 1)
        out = jax.nn.relu(h + res)
    return out


# -------------------- deterministic parameter construction --------------------

def _xavier(key, shape_koi):
    K, cout, cin = shape_koi
    bound = (6.0 / (cin * K + cout * K)) ** 0.5
    return jax.random.uniform(key, shape_koi, jnp.float32, -bound, bound)


def make_params(key, num_inputs, num_channels, kernel_size):
    params = []
    in_c = num_inputs
    for out_c in num_channels:
        key, k1, k2, k3, k4, k5, k6 = jax.random.split(key, 7)
        w1 = _xavier(k1, (kernel_size, out_c, in_c))
        b1 = jax.random.uniform(k2, (out_c, 1), jnp.float32, -0.1, 0.1)
        w2 = _xavier(k3, (kernel_size, out_c, out_c))
        b2 = jax.random.uniform(k4, (out_c, 1), jnp.float32, -0.1, 0.1)
        if in_c != out_c:
            wd = _xavier(k5, (1, out_c, in_c))
            bd = jax.random.uniform(k6, (out_c, 1), jnp.float32, -0.1, 0.1)
        else:
            wd, bd = None, None
        params.append((w1, b1, w2, b2, wd, bd))
        in_c = out_c
    return params


if __name__ == "__main__":
    key = jax.random.PRNGKey(0)
    k_small, k_large = jax.random.split(key)

    # --- small config: 2 blocks (dilations 1, 2), second block has a downsample ---
    N, num_inputs, L = 2, 8, 16
    num_channels = (8, 16)
    kernel_size = 2
    kx, kp = jax.random.split(k_small)
    x = jax.random.normal(kx, (N, num_inputs, L), jnp.float32)
    params = make_params(kp, num_inputs, num_channels, kernel_size)

    tcn_f32 = jax.jit(lambda xx, pp: temporal_conv_net(xx, pp, kernel_size))
    out = jax.block_until_ready(tcn_f32(x, params))
    ref = tcn_ref(x, params)
    assert out.shape == (N, num_channels[-1], L)
    assert jnp.allclose(out, ref, atol=1e-3, rtol=1e-3), (
        f"f32 max abs err {jnp.max(jnp.abs(out - ref))}")

    # bf16 MXU operands (perf mode, recommended default on v5e); residual chain stays f32.
    tcn_bf16 = jax.jit(lambda xx, pp: temporal_conv_net(xx, pp, kernel_size,
                                                        compute_dtype=jnp.bfloat16))
    out_bf16 = jax.block_until_ready(tcn_bf16(x, params))
    assert out_bf16.shape == (N, num_channels[-1], L)
    assert jnp.allclose(out_bf16, ref, atol=1e-1, rtol=1e-1), (
        f"bf16 max abs err {jnp.max(jnp.abs(out_bf16 - ref))}")

    # --- larger config exercising the multi-step lane grid (pipelining / multi-TC sharding),
    #     K=3, dilations 1/2/4, mix of downsample / identity residuals ---
    N2, C0_2, L2 = 8, 8, 128
    channels2 = (16, 16, 32)
    K2 = 3
    kx2, kp2 = jax.random.split(k_large)
    x2 = jax.random.normal(kx2, (N2, C0_2, L2), jnp.float32)
    params2 = make_params(kp2, C0_2, channels2, K2)

    tcn2 = jax.jit(lambda xx, pp: temporal_conv_net(xx, pp, K2))
    out2 = jax.block_until_ready(tcn2(x2, params2))
    ref2 = tcn_ref(x2, params2)
    assert out2.shape == (N2, channels2[-1], L2)
    assert jnp.allclose(out2, ref2, atol=2e-3, rtol=2e-3), (
        f"f32 (large) max abs err {jnp.max(jnp.abs(out2 - ref2))}")

    print("KERNEL_OK")
</pallas_src>

<mosaic_0001>
module attributes {stable_mosaic.version = 11 : i64} {
  func.func @_tcn_kernel(%arg0: i32, %arg1: memref<8x32xf32, #tpu.memory_space<vmem>>, %arg2: memref<16x8xf32, #tpu.memory_space<vmem>>, %arg3: memref<8x1xf32, #tpu.memory_space<vmem>>, %arg4: memref<16x8xf32, #tpu.memory_space<vmem>>, %arg5: memref<8x1xf32, #tpu.memory_space<vmem>>, %arg6: memref<32x8xf32, #tpu.memory_space<vmem>>, %arg7: memref<16x1xf32, #tpu.memory_space<vmem>>, %arg8: memref<32x16xf32, #tpu.memory_space<vmem>>, %arg9: memref<16x1xf32, #tpu.memory_space<vmem>>, %arg10: memref<16x8xf32, #tpu.memory_space<vmem>>, %arg11: memref<16x1xf32, #tpu.memory_space<vmem>>, %arg12: memref<16x32xf32, #tpu.memory_space<vmem>>) attributes {dimension_semantics = [#tpu.dimension_semantics<parallel>], iteration_bounds = array<i64: 1>, scalar_prefetch = 0 : i64, scratch_operands = 0 : i64, tpu.core_type = #tpu.core_type<tc>, window_params = [{transform_indices = @transform_0, window_bounds = array<i64: 8, 32>}, {pipeline_mode = #tpu.pipeline_mode<synchronous>, transform_indices = @transform_1, window_bounds = array<i64: 16, 8>}, {pipeline_mode = #tpu.pipeline_mode<synchronous>, transform_indices = @transform_2, window_bounds = array<i64: 8, 1>}, {pipeline_mode = #tpu.pipeline_mode<synchronous>, transform_indices = @transform_3, window_bounds = array<i64: 16, 8>}, {pipeline_mode = #tpu.pipeline_mode<synchronous>, transform_indices = @transform_4, window_bounds = array<i64: 8, 1>}, {pipeline_mode = #tpu.pipeline_mode<synchronous>, transform_indices = @transform_5, window_bounds = array<i64: 32, 8>}, {pipeline_mode = #tpu.pipeline_mode<synchronous>, transform_indices = @transform_6, window_bounds = array<i64: 16, 1>}, {pipeline_mode = #tpu.pipeline_mode<synchronous>, transform_indices = @transform_7, window_bounds = array<i64: 32, 16>}, {pipeline_mode = #tpu.pipeline_mode<synchronous>, transform_indices = @transform_8, window_bounds = array<i64: 16, 1>}, {pipeline_mode = #tpu.pipeline_mode<synchronous>, transform_indices = @transform_9, window_bounds = array<i64: 16, 8>}, {pipeline_mode = #tpu.pipeline_mode<synchronous>, transform_indices = @transform_10, window_bounds = array<i64: 16, 1>}, {transform_indices = @transform_11, window_bounds = array<i64: 16, 32>}]} {
    %0 = tpu.iota {dimensions = array<i32: 1>} : vector<1x32xi32>
    %c16_i32 = arith.constant 16 : i32
    %c0_i32 = arith.constant 0 : i32
    %1 = arith.cmpi eq, %c16_i32, %c0_i32 : i32
    %c1_i32 = arith.constant 1 : i32
    %2 = arith.select %1, %c1_i32, %c16_i32 : i32
    %3 = vector.broadcast %2 : i32 to vector<1x32xi32>
    %4 = arith.remsi %0, %3 : vector<1x32xi32>
    %c0_i32_0 = arith.constant 0 : i32
    %5 = vector.broadcast %c0_i32_0 : i32 to vector<1x32xi32>
    %6 = arith.cmpi ne, %4, %5 : vector<1x32xi32>
    %c0_i32_1 = arith.constant 0 : i32
    %7 = vector.broadcast %c0_i32_1 : i32 to vector<1x32xi32>
    %8 = arith.cmpi slt, %4, %7 : vector<1x32xi32>
    %c0_i32_2 = arith.constant 0 : i32
    %9 = arith.cmpi slt, %2, %c0_i32_2 : i32
    %10 = vector.broadcast %9 : i1 to vector<1x32xi1>
    %11 = vector.broadcast %10 : vector<1x32xi1> to vector<1x32xi1>
    %12 = arith.xori %8, %11 : vector<1x32xi1>
    %13 = arith.andi %12, %6 : vector<1x32xi1>
    %14 = vector.broadcast %2 : i32 to vector<1x32xi32>
    %15 = arith.addi %4, %14 : vector<1x32xi32>
    %16 = arith.select %13, %15, %4 : vector<1x32xi1>, vector<1x32xi32>
    %c1_i32_3 = arith.constant 1 : i32
    %17 = vector.broadcast %c1_i32_3 : i32 to vector<1x32xi32>
    %18 = arith.cmpi sge, %16, %17 : vector<1x32xi32>
    %c2_i32 = arith.constant 2 : i32
    %19 = vector.broadcast %c2_i32 : i32 to vector<1x32xi32>
    %20 = arith.cmpi sge, %16, %19 : vector<1x32xi32>
    %c0 = arith.constant 0 : index
    %c0_4 = arith.constant 0 : index
    %21 = vector.load %arg1[%c0, %c0_4] : memref<8x32xf32, #tpu.memory_space<vmem>>, vector<8x32xf32>
    %c0_5 = arith.constant 0 : index
    %c0_6 = arith.constant 0 : index
    %22 = vector.load %arg2[%c0_5, %c0_6] : memref<16x8xf32, #tpu.memory_space<vmem>>, vector<16x8xf32>
    %cst = arith.constant dense<0.000000e+00> : vector<16x32xf32>
    %23 = tpu.matmul %22, %21, %cst {dimension_numbers = #tpu.dot_dimension_numbers<[1], [0], [0], [1], [0, 0, 1, 1], [], []>} : vector<16x8xf32>, vector<8x32xf32>, vector<16x32xf32> -> vector<16x32xf32>
    %24 = vector.extract_strided_slice %23 {offsets = [8, 0], sizes = [8, 32], strides = [1, 1]} : vector<16x32xf32> to vector<8x32xf32>
    %25 = vector.extract_strided_slice %23 {offsets = [0, 0], sizes = [8, 32], strides = [1, 1]} : vector<16x32xf32> to vector<8x32xf32>
    %c1_i32_7 = arith.constant 1 : i32
    %26 = tpu.dynamic_rotate %25 by %c1_i32_7 dim 1 : vector<8x32xf32>, i32 -> vector<8x32xf32>
    %cst_8 = arith.constant 0.000000e+00 : f32
    %27 = vector.shape_cast %18 : vector<1x32xi1> to vector<1x32xi1>
    %28 = vector.broadcast %27 : vector<1x32xi1> to vector<8x32xi1>
    %29 = vector.broadcast %cst_8 : f32 to vector<8x32xf32>
    %30 = arith.select %28, %26, %29 : vector<8x32xi1>, vector<8x32xf32>
    %31 = arith.addf %24, %30 : vector<8x32xf32>
    %c0_9 = arith.constant 0 : index
    %c0_10 = arith.constant 0 : index
    %32 = vector.load %arg3[%c0_9, %c0_10] : memref<8x1xf32, #tpu.memory_space<vmem>>, vector<8x1xf32>
    %33 = vector.broadcast %32 : vector<8x1xf32> to vector<8x32xf32>
    %34 = arith.addf %31, %33 : vector<8x32xf32>
    %cst_11 = arith.constant 0.000000e+00 : f32
    %35 = vector.broadcast %cst_11 : f32 to vector<8x32xf32>
    %36 = arith.maximumf %34, %35 : vector<8x32xf32>
    %c0_12 = arith.constant 0 : index
    %c0_13 = arith.constant 0 : index
    %37 = vector.load %arg4[%c0_12, %c0_13] : memref<16x8xf32, #tpu.memory_space<vmem>>, vector<16x8xf32>
    %cst_14 = arith.constant dense<0.000000e+00> : vector<16x32xf32>
    %38 = tpu.matmul %37, %36, %cst_14 {dimension_numbers = #tpu.dot_dimension_numbers<[1], [0], [0], [1], [0, 0, 1, 1], [], []>} : vector<16x8xf32>, vector<8x32xf32>, vector<16x32xf32> -> vector<16x32xf32>
    %39 = vector.extract_strided_slice %38 {offsets = [8, 0], sizes = [8, 32], strides = [1, 1]} : vector<16x32xf32> to vector<8x32xf32>
    %40 = vector.extract_strided_slice %38 {offsets = [0, 0], sizes = [8, 32], strides = [1, 1]} : vector<16x32xf32> to vector<8x32xf32>
    %c1_i32_15 = arith.constant 1 : i32
    %41 = tpu.dynamic_rotate %40 by %c1_i32_15 dim 1 : vector<8x32xf32>, i32 -> vector<8x32xf32>
    %cst_16 = arith.constant 0.000000e+00 : f32
    %42 = vector.shape_cast %18 : vector<1x32xi1> to vector<1x32xi1>
    %43 = vector.broadcast %42 : vector<1x32xi1> to vector<8x32xi1>
    %44 = vector.broadcast %cst_16 : f32 to vector<8x32xf32>
    %45 = arith.select %43, %41, %44 : vector<8x32xi1>, vector<8x32xf32>
    %46 = arith.addf %39, %45 : vector<8x32xf32>
    %c0_17 = arith.constant 0 : index
    %c0_18 = arith.constant 0 : index
    %47 = vector.load %arg5[%c0_17, %c0_18] : memref<8x1xf32, #tpu.memory_space<vmem>>, vector<8x1xf32>
    %48 = vector.broadcast %47 : vector<8x1xf32> to vector<8x32xf32>
    %49 = arith.addf %46, %48 : vector<8x32xf32>
    %cst_19 = arith.constant 0.000000e+00 : f32
    %50 = vector.broadcast %cst_19 : f32 to vector<8x32xf32>
    %51 = arith.maximumf %49, %50 : vector<8x32xf32>
    %52 = arith.addf %51, %21 : vector<8x32xf32>
    %cst_20 = arith.constant 0.000000e+00 : f32
    %53 = vector.broadcast %cst_20 : f32 to vector<8x32xf32>
    %54 = arith.maximumf %52, %53 : vector<8x32xf32>
    %c0_21 = arith.constant 0 : index
    %c0_22 = arith.constant 0 : index
    %55 = vector.load %arg6[%c0_21, %c0_22] : memref<32x8xf32, #tpu.memory_space<vmem>>, vector<32x8xf32>
    %cst_23 = arith.constant dense<0.000000e+00> : vector<32x32xf32>
    %56 = tpu.matmul %55, %54, %cst_23 {dimension_numbers = #tpu.dot_dimension_numbers<[1], [0], [0], [1], [0, 0, 1, 1], [], []>} : vector<32x8xf32>, vector<8x32xf32>, vector<32x32xf32> -> vector<32x32xf32>
    %57 = vector.extract_strided_slice %56 {offsets = [16, 0], sizes = [16, 32], strides = [1, 1]} : vector<32x32xf32> to vector<16x32xf32>
    %58 = vector.extract_strided_slice %56 {offsets = [0, 0], sizes = [16, 32], strides = [1, 1]} : vector<32x32xf32> to vector<16x32xf32>
    %c2_i32_24 = arith.constant 2 : i32
    %59 = tpu.dynamic_rotate %58 by %c2_i32_24 dim 1 : vector<16x32xf32>, i32 -> vector<16x32xf32>
    %cst_25 = arith.constant 0.000000e+00 : f32
    %60 = vector.shape_cast %20 : vector<1x32xi1> to vector<1x32xi1>
    %61 = vector.broadcast %60 : vector<1x32xi1> to vector<16x32xi1>
    %62 = vector.broadcast %cst_25 : f32 to vector<16x32xf32>
    %63 = arith.select %61, %59, %62 : vector<16x32xi1>, vector<16x32xf32>
    %64 = arith.addf %57, %63 : vector<16x32xf32>
    %c0_26 = arith.constant 0 : index
    %c0_27 = arith.constant 0 : index
    %65 = vector.load %arg7[%c0_26, %c0_27] : memref<16x1xf32, #tpu.memory_space<vmem>>, vector<16x1xf32>
    %66 = vector.broadcast %65 : vector<16x1xf32> to vector<16x32xf32>
    %67 = arith.addf %64, %66 : vector<16x32xf32>
    %cst_28 = arith.constant 0.000000e+00 : f32
    %68 = vector.broadcast %cst_28 : f32 to vector<16x32xf32>
    %69 = arith.maximumf %67, %68 : vector<16x32xf32>
    %c0_29 = arith.constant 0 : index
    %c0_30 = arith.constant 0 : index
    %70 = vector.load %arg8[%c0_29, %c0_30] : memref<32x16xf32, #tpu.memory_space<vmem>>, vector<32x16xf32>
    %cst_31 = arith.constant dense<0.000000e+00> : vector<32x32xf32>
    %71 = tpu.matmul %70, %69, %cst_31 {dimension_numbers = #tpu.dot_dimension_numbers<[1], [0], [0], [1], [0, 0, 1, 1], [], []>} : vector<32x16xf32>, vector<16x32xf32>, vector<32x32xf32> -> vector<32x32xf32>
    %72 = vector.extract_strided_slice %71 {offsets = [16, 0], sizes = [16, 32], strides = [1, 1]} : vector<32x32xf32> to vector<16x32xf32>
    %73 = vector.extract_strided_slice %71 {offsets = [0, 0], sizes = [16, 32], strides = [1, 1]} : vector<32x32xf32> to vector<16x32xf32>
    %c2_i32_32 = arith.constant 2 : i32
    %74 = tpu.dynamic_rotate %73 by %c2_i32_32 dim 1 : vector<16x32xf32>, i32 -> vector<16x32xf32>
    %cst_33 = arith.constant 0.000000e+00 : f32
    %75 = vector.shape_cast %20 : vector<1x32xi1> to vector<1x32xi1>
    %76 = vector.broadcast %75 : vector<1x32xi1> to vector<16x32xi1>
    %77 = vector.broadcast %cst_33 : f32 to vector<16x32xf32>
    %78 = arith.select %76, %74, %77 : vector<16x32xi1>, vector<16x32xf32>
    %79 = arith.addf %72, %78 : vector<16x32xf32>
    %c0_34 = arith.constant 0 : index
    %c0_35 = arith.constant 0 : index
    %80 = vector.load %arg9[%c0_34, %c0_35] : memref<16x1xf32, #tpu.memory_space<vmem>>, vector<16x1xf32>
    %81 = vector.broadcast %80 : vector<16x1xf32> to vector<16x32xf32>
    %82 = arith.addf %79, %81 : vector<16x32xf32>
    %cst_36 = arith.constant 0.000000e+00 : f32
    %83 = vector.broadcast %cst_36 : f32 to vector<16x32xf32>
    %84 = arith.maximumf %82, %83 : vector<16x32xf32>
    %c0_37 = arith.constant 0 : index
    %c0_38 = arith.constant 0 : index
    %85 = vector.load %arg10[%c0_37, %c0_38] : memref<16x8xf32, #tpu.memory_space<vmem>>, vector<16x8xf32>
    %cst_39 = arith.constant dense<0.000000e+00> : vector<16x32xf32>
    %86 = tpu.matmul %85, %54, %cst_39 {dimension_numbers = #tpu.dot_dimension_numbers<[1], [0], [0], [1], [0, 0, 1, 1], [], []>} : vector<16x8xf32>, vector<8x32xf32>, vector<16x32xf32> -> vector<16x32xf32>
    %c0_40 = arith.constant 0 : index
    %c0_41 = arith.constant 0 : index
    %87 = vector.load %arg11[%c0_40, %c0_41] : memref<16x1xf32, #tpu.memory_space<vmem>>, vector<16x1xf32>
    %88 = vector.broadcast %87 : vector<16x1xf32> to vector<16x32xf32>
    %89 = arith.addf %86, %88 : vector<16x32xf32>
    %90 = arith.addf %84, %89 : vector<16x32xf32>
    %cst_42 = arith.constant 0.000000e+00 : f32
    %91 = vector.broadcast %cst_42 : f32 to vector<16x32xf32>
    %92 = arith.maximumf %90, %91 : vector<16x32xf32>
    %c0_43 = arith.constant 0 : index
    %c0_44 = arith.constant 0 : index
    %93 = vector.load %arg12[%c0_43, %c0_44] : memref<16x32xf32, #tpu.memory_space<vmem>>, vector<16x32xf32>
    tpu.vector_store %arg12[%c0_43, %c0_44], %92 {strides = array<i32>} : memref<16x32xf32, #tpu.memory_space<vmem>>, vector<16x32xf32>,
    return
  }
  func.func @transform_0(%arg0: i32) -> (i32, i32) {
    %c0_i32 = arith.constant 0 : i32
    %c0_i32_0 = arith.constant 0 : i32
    return %c0_i32, %arg0 : i32, i32
  }
  func.func @transform_1(%arg0: i32) -> (i32, i32) {
    %c0_i32 = arith.constant 0 : i32
    %c0_i32_0 = arith.constant 0 : i32
    %c0_i32_1 = arith.constant 0 : i32
    return %c0_i32, %c0_i32_0 : i32, i32
  }
  func.func @transform_2(%arg0: i32) -> (i32, i32) {
    %c0_i32 = arith.constant 0 : i32
    %c0_i32_0 = arith.constant 0 : i32
    %c0_i32_1 = arith.constant 0 : i32
    return %c0_i32, %c0_i32_0 : i32, i32
  }
  func.func @transform_3(%arg0: i32) -> (i32, i32) {
    %c0_i32 = arith.constant 0 : i32
    %c0_i32_0 = arith.constant 0 : i32
    %c0_i32_1 = arith.constant 0 : i32
    return %c0_i32, %c0_i32_0 : i32, i32
  }
  func.func @transform_4(%arg0: i32) -> (i32, i32) {
    %c0_i32 = arith.constant 0 : i32
    %c0_i32_0 = arith.constant 0 : i32
    %c0_i32_1 = arith.constant 0 : i32
    return %c0_i32, %c0_i32_0 : i32, i32
  }
  func.func @transform_5(%arg0: i32) -> (i32, i32) {
    %c0_i32 = arith.constant 0 : i32
    %c0_i32_0 = arith.constant 0 : i32
    %c0_i32_1 = arith.constant 0 : i32
    return %c0_i32, %c0_i32_0 : i32, i32
  }
  func.func @transform_6(%arg0: i32) -> (i32, i32) {
    %c0_i32 = arith.constant 0 : i32
    %c0_i32_0 = arith.constant 0 : i32
    %c0_i32_1 = arith.constant 0 : i32
    return %c0_i32, %c0_i32_0 : i32, i32
  }
  func.func @transform_7(%arg0: i32) -> (i32, i32) {
    %c0_i32 = arith.constant 0 : i32
    %c0_i32_0 = arith.constant 0 : i32
    %c0_i32_1 = arith.constant 0 : i32
    return %c0_i32, %c0_i32_0 : i32, i32
  }
  func.func @transform_8(%arg0: i32) -> (i32, i32) {
    %c0_i32 = arith.constant 0 : i32
    %c0_i32_0 = arith.constant 0 : i32
    %c0_i32_1 = arith.constant 0 : i32
    return %c0_i32, %c0_i32_0 : i32, i32
  }
  func.func @transform_9(%arg0: i32) -> (i32, i32) {
    %c0_i32 = arith.constant 0 : i32
    %c0_i32_0 = arith.constant 0 : i32
    %c0_i32_1 = arith.constant 0 : i32
    return %c0_i32, %c0_i32_0 : i32, i32
  }
  func.func @transform_10(%arg0: i32) -> (i32, i32) {
    %c0_i32 = arith.constant 0 : i32
    %c0_i32_0 = arith.constant 0 : i32
    %c0_i32_1 = arith.constant 0 : i32
    return %c0_i32, %c0_i32_0 : i32, i32
  }
  func.func @transform_11(%arg0: i32) -> (i32, i32) {
    %c0_i32 = arith.constant 0 : i32
    %c0_i32_0 = arith.constant 0 : i32
    return %c0_i32, %arg0 : i32, i32
  }
}

</mosaic_0001>

<llo_original>
// kernel: _lambda_.1
$region0: #{_lambda_.1}
  #allocation0 [shape = 'u32[]', space=smem, size = 0x4, offset = 0x4, fixed_abs, tag = 'smem constant byte address 0x4 - core index']
  #allocation1 [shape = 'u32[72,128]{1,0:T(1,128)}', space=vmem, size = 0x9000, scoped, tag = 'internal scratch']
  %s0 = inlined_call_operand.vmem [shape: f32[8,32], index: 0, kind: input, shape index: {}]
  %s1 = inlined_call_operand.vmem [shape: f32[16,8], index: 1, kind: input, shape index: {}]
  %s2 = inlined_call_operand.vmem [shape: f32[8,1], index: 2, kind: input, shape index: {}]
  %s3 = inlined_call_operand.vmem [shape: f32[16,8], index: 3, kind: input, shape index: {}]
  %s4 = inlined_call_operand.vmem [shape: f32[8,1], index: 4, kind: input, shape index: {}]
  %s5 = inlined_call_operand.vmem [shape: f32[32,8], index: 5, kind: input, shape index: {}]
  %s6 = inlined_call_operand.vmem [shape: f32[16,1], index: 6, kind: input, shape index: {}]
  %s7 = inlined_call_operand.vmem [shape: f32[32,16], index: 7, kind: input, shape index: {}]
  %s8 = inlined_call_operand.vmem [shape: f32[16,1], index: 8, kind: input, shape index: {}]
  %s9 = inlined_call_operand.vmem [shape: f32[16,8], index: 9, kind: input, shape index: {}]
  %s10 = inlined_call_operand.vmem [shape: f32[16,1], index: 10, kind: input, shape index: {}]
  %s11 = inlined_call_operand.vmem [shape: f32[16,32], index: 11, kind: output, shape index: {}]
  %s12 = sld [smem:[#allocation0]]
  $region54: #{_lambda_.1} parent=0
    _
  %s14 = ssub.s32 1, %s12
  %s15 = scalar_select 0, %s14, %s12
  // Predicated region
  $region2: #{_lambda_.1} parent=0 // pred_check
    _
  $region3: #{_lambda_.1} parent=0 // pred_check_branch
    %17 = sbr.rel (0) target = $region5
  $region4: #{_lambda_.1} parent=0 // pred_region
    _
  $region5: #{_lambda_.1} parent=0 // pred_fallthru
    _
  // Predicated region
  $region6: #{_lambda_.1} parent=0 // pred_check
    _
  $region7: #{_lambda_.1} parent=0 // pred_check_branch
    %19 = sbr.rel (0) target = $region9
  $region8: #{_lambda_.1} parent=0 // pred_region
    _
  $region9: #{_lambda_.1} parent=0 // pred_fallthru
    _
  // Predicated region
  $region10: #{_lambda_.1} parent=0 // pred_check
    _
  $region11: #{_lambda_.1} parent=0 // pred_check_branch
    %21 = sbr.rel (0) target = $region13
  $region12: #{_lambda_.1} parent=0 // pred_region
    _
  $region13: #{_lambda_.1} parent=0 // pred_fallthru
    _
  // Predicated region
  $region14: #{_lambda_.1} parent=0 // pred_check
    _
  $region15: #{_lambda_.1} parent=0 // pred_check_branch
    %23 = sbr.rel (0) target = $region17
  $region16: #{_lambda_.1} parent=0 // pred_region
    _
  $region17: #{_lambda_.1} parent=0 // pred_fallthru
    _
  // Predicated region
  $region18: #{_lambda_.1} parent=0 // pred_check
    _
  $region19: #{_lambda_.1} parent=0 // pred_check_branch
    %25 = sbr.rel (0) target = $region21
  $region20: #{_lambda_.1} parent=0 // pred_region
    _
  $region21: #{_lambda_.1} parent=0 // pred_fallthru
    _
  // Predicated region
  $region22: #{_lambda_.1} parent=0 // pred_check
    _
  $region23: #{_lambda_.1} parent=0 // pred_check_branch
    %27 = sbr.rel (0) target = $region25
  $region24: #{_lambda_.1} parent=0 // pred_region
    _
  $region25: #{_lambda_.1} parent=0 // pred_fallthru
    _
  // Predicated region
  $region26: #{_lambda_.1} parent=0 // pred_check
    _
  $region27: #{_lambda_.1} parent=0 // pred_check_branch
    %29 = sbr.rel (0) target = $region29
  $region28: #{_lambda_.1} parent=0 // pred_region
    _
  $region29: #{_lambda_.1} parent=0 // pred_fallthru
    _
  // Predicated region
  $region30: #{_lambda_.1} parent=0 // pred_check
    _
  $region31: #{_lambda_.1} parent=0 // pred_check_branch
    %31 = sbr.rel (0) target = $region33
  $region32: #{_lambda_.1} parent=0 // pred_region
    _
  $region33: #{_lambda_.1} parent=0 // pred_fallthru
    _
  // Predicated region
  $region34: #{_lambda_.1} parent=0 // pred_check
    _
  $region35: #{_lambda_.1} parent=0 // pred_check_branch
    %33 = sbr.rel (0) target = $region37
  $region36: #{_lambda_.1} parent=0 // pred_region
    _
  $region37: #{_lambda_.1} parent=0 // pred_fallthru
    _
  // Predicated region
  $region38: #{_lambda_.1} parent=0 // pred_check
    _
  $region39: #{_lambda_.1} parent=0 // pred_check_branch
    %35 = sbr.rel (0) target = $region41
  $region40: #{_lambda_.1} parent=0 // pred_region
    _
  $region41: #{_lambda_.1} parent=0 // pred_fallthru
    _
  // Predicated region
  $region42: #{_lambda_.1} parent=0 // pred_check
    _
  $region43: #{_lambda_.1} parent=0 // pred_check_branch
    %37 = sbr.rel (0) target = $region45
  $region44: #{_lambda_.1} parent=0 // pred_region
    _
  $region45: #{_lambda_.1} parent=0 // pred_fallthru
    _
  %v38 = vlaneseq
  %v39 = vand.u32 %v38, 127
  %vm40 = vcmp.lt.s32.totalorder %v39, 0
  %v41 = vsub.s32 0, %v39
  %v42 = vsel %vm40, %v41, %v39
  %v43 = vshrl.u32 %v42, 4
  %v44 = vand.u32 %v42, 15
  %v45 = vsub.s32 0, %v44
  %v46 = vsel %vm40, %v45, %v44
  %vm47 = vcmp.ne.s32.totalorder %v46, 0
  %vm48 = vcmp.lt.s32.totalorder %v46, 0
  %vm49 = vmand %vm48, %vm47
  %v50 = vadd.s32 %v46, 16
  %v51 = vsel %vm49, %v50, %v46
  %vm52 = vcmp.ge.s32.totalorder %v51, 1
  %vm53 = vcmp.ge.s32.totalorder %v51, 2
  %v54 = vld [vmem:[%s0] sm:$0xff]
  %v55 = vld [vmem:[%s1] sm:$0xff]
  %v56 = vld [vmem:[%s1 + $0x8] sm:$0xff]
  %vm57 = vcmask 64512
  %v59 = vsel %vm57, %v55, 0
  %v62 = vsel %vm57, %v56, 0
  %64 = vmatpush.msra.mxu0 0.0
  %65 = vmatpush.msra.mxu0 0.0
  %66 = vmatpush.msra.mxu0 0.0
  %67 = vmatpush.msra.mxu0 0.0
  %68 = vmatpush.msra.mxu0 0.0
  %69 = vmatpush.msra.mxu0 0.0
  %70 = vmatpush.msra.mxu0 0.0
  %71 = vmatpush.msra.mxu0 0.0
  %72 = vmatpush.msra.mxu0 0.0
  %73 = vmatpush.msra.mxu0 0.0
  %74 = vmatpush.msra.mxu0 0.0
  %75 = vmatpush.msra.mxu0 0.0
  %76 = vmatpush.msra.mxu0 0.0
  %77 = vmatpush.msra.mxu0 0.0
  %78 = vmatpush.msra.mxu0 0.0
  %79 = vmatpush.msra.mxu0 %v54
  %80 = vmatmul.f32.gmra.mxu0 %v59
  %v81 = vpop.f32.mrf.mxu0
  %v82 = vadd.f32 0.0, %v81
  %83 = vmatmul.f32.gmra.mxu0 %v62
  %v84 = vpop.f32.mrf.mxu0
  %v85 = vadd.f32 0.0, %v84
  %86 = vdwg.mxu0
  %vm87 = vcmask 1047808
  %88 = vrot.lane.b32.xlu0 %v82, 32
  %v89 = vpop.permute.xlu0 %88
  %v90 = vsel %vm87, %v89, %v82
  %91 = vrot.lane.b32.xlu0 %v90, 32
  %v92 = vpop.permute.xlu0 %91
  %v93 = vsel %vm87, %v92, %v82
  %v94 = vsel %vm52, 1, 0
  %vm95 = vcmp.eq.s32.totalorder %v94, 1
  %97 = vrot.lane.b32.xlu0 %v93, 97
  %v98 = vpop.permute.xlu0 %97
  %v100 = vsel %vm95, %v98, 0.0
  %v101 = vadd.f32 %v85, %v100
  %v102 = vld [vmem:[%s2] sm:$0xff]
  %104 = vset.pattern.permute.xlu0 0
  %105 = vperm.xlu0 %104, %v102
  %v106 = vpop.permute.xlu0 %105
  %v108 = vadd.f32 %v101, %v106
  %v109 = vmax.f32 %v108, 0.0
  %v110 = vld [vmem:[%s3] sm:$0xff]
  %v111 = vld [vmem:[%s3 + $0x8] sm:$0xff]
  %v113 = vsel %vm57, %v110, 0
  %v116 = vsel %vm57, %v111, 0
  %118 = vmatpush.msra.mxu0 0.0
  %119 = vmatpush.msra.mxu0 0.0
  %120 = vmatpush.msra.mxu0 0.0
  %121 = vmatpush.msra.mxu0 0.0
  %122 = vmatpush.msra.mxu0 0.0
  %123 = vmatpush.msra.mxu0 0.0
  %124 = vmatpush.msra.mxu0 0.0
  %125 = vmatpush.msra.mxu0 0.0
  %126 = vmatpush.msra.mxu0 0.0
  %127 = vmatpush.msra.mxu0 0.0
  %128 = vmatpush.msra.mxu0 0.0
  %129 = vmatpush.msra.mxu0 0.0
  %130 = vmatpush.msra.mxu0 0.0
  %131 = vmatpush.msra.mxu0 0.0
  %132 = vmatpush.msra.mxu0 0.0
  %133 = vmatpush.msra.mxu0 %v109
  %134 = vmatmul.f32.gmra.mxu0 %v113
  %v135 = vpop.f32.mrf.mxu0
  %v136 = vadd.f32 0.0, %v135
  %137 = vmatmul.f32.gmra.mxu0 %v116
  %v138 = vpop.f32.mrf.mxu0
  %v139 = vadd.f32 0.0, %v138
  %140 = vdwg.mxu0
  %141 = vrot.lane.b32.xlu0 %v136, 32
  %v142 = vpop.permute.xlu0 %141
  %v143 = vsel %vm87, %v142, %v136
  %144 = vrot.lane.b32.xlu0 %v143, 32
  %v145 = vpop.permute.xlu0 %144
  %v146 = vsel %vm87, %v145, %v136
  %148 = vrot.lane.b32.xlu0 %v146, 97
  %v149 = vpop.permute.xlu0 %148
  %v151 = vsel %vm95, %v149, 0.0
  %v152 = vadd.f32 %v139, %v151
  %v153 = vld [vmem:[%s4] sm:$0xff]
  %155 = vset.pattern.permute.xlu0 0
  %156 = vperm.xlu0 %155, %v153
  %v157 = vpop.permute.xlu0 %156
  %v159 = vadd.f32 %v152, %v157
  %v160 = vmax.f32 %v159, 0.0
  %v161 = vadd.f32 %v160, %v54
  %v162 = vmax.f32 %v161, 0.0
  %v163 = vld [vmem:[%s5] sm:$0xff]
  %v164 = vld [vmem:[%s5 + $0x8] sm:$0xff]
  %v165 = vld [vmem:[%s5 + $0x10] sm:$0xff]
  %v166 = vld [vmem:[%s5 + $0x18] sm:$0xff]
  %v168 = vsel %vm57, %v163, 0
  %v171 = vsel %vm57, %v164, 0
  %v174 = vsel %vm57, %v165, 0
  %v177 = vsel %vm57, %v166, 0
  %179 = vmatpush.msra.mxu0 0.0
  %180 = vmatpush.msra.mxu0 0.0
  %181 = vmatpush.msra.mxu0 0.0
  %182 = vmatpush.msra.mxu0 0.0
  %183 = vmatpush.msra.mxu0 0.0
  %184 = vmatpush.msra.mxu0 0.0
  %185 = vmatpush.msra.mxu0 0.0
  %186 = vmatpush.msra.mxu0 0.0
  %187 = vmatpush.msra.mxu0 0.0
  %188 = vmatpush.msra.mxu0 0.0
  %189 = vmatpush.msra.mxu0 0.0
  %190 = vmatpush.msra.mxu0 0.0
  %191 = vmatpush.msra.mxu0 0.0
  %192 = vmatpush.msra.mxu0 0.0
  %193 = vmatpush.msra.mxu0 0.0
  %194 = vmatpush.msra.mxu0 %v162
  %195 = vmatmul.f32.gmra.mxu0 %v168
  %v196 = vpop.f32.mrf.mxu0
  %v197 = vadd.f32 0.0, %v196
  %198 = vmatmul.f32.gmra.mxu0 %v171
  %v199 = vpop.f32.mrf.mxu0
  %v200 = vadd.f32 0.0, %v199
  %201 = vmatmul.f32.gmra.mxu0 %v174
  %v202 = vpop.f32.mrf.mxu0
  %v203 = vadd.f32 0.0, %v202
  %204 = vmatmul.f32.gmra.mxu0 %v177
  %v205 = vpop.f32.mrf.mxu0
  %v206 = vadd.f32 0.0, %v205
  %207 = vdwg.mxu0
  %208 = vrot.lane.b32.xlu0 %v197, 32
  %v209 = vpop.permute.xlu0 %208
  %v210 = vsel %vm87, %v209, %v197
  %211 = vrot.lane.b32.xlu0 %v200, 32
  %v212 = vpop.permute.xlu0 %211
  %v213 = vsel %vm87, %v212, %v200
  %214 = vrot.lane.b32.xlu0 %v210, 32
  %v215 = vpop.permute.xlu0 %214
  %216 = vrot.lane.b32.xlu0 %v213, 32
  %v217 = vpop.permute.xlu0 %216
  %v218 = vsel %vm87, %v215, %v197
  %v219 = vsel %vm87, %v217, %v200
  %v220 = vsel %vm53, 1, 0
  %vm221 = vcmp.eq.s32.totalorder %v220, 1
  %224 = vrot.lane.b32.xlu0 %v218, 98
  %v225 = vpop.permute.xlu0 %224
  %226 = vrot.lane.b32.xlu0 %v219, 98
  %v227 = vpop.permute.xlu0 %226
  %v230 = vsel %vm221, %v225, 0.0
  %v231 = vsel %vm221, %v227, 0.0
  %v232 = vadd.f32 %v203, %v230
  %v233 = vadd.f32 %v206, %v231
  %v234 = vld [vmem:[%s6] sm:$0xff]
  %v235 = vld [vmem:[%s6 + $0x8] sm:$0xff]
  %237 = vset.pattern.permute.xlu0 0
  %238 = vperm.xlu0 %237, %v234
  %v239 = vpop.permute.xlu0 %238
  %242 = vset.pattern.permute.xlu0 0
  %243 = vperm.xlu0 %242, %v235
  %v244 = vpop.permute.xlu0 %243
  %v246 = vadd.f32 %v232, %v239
  %v247 = vadd.f32 %v233, %v244
  %v248 = vmax.f32 %v246, 0.0
  %v249 = vmax.f32 %v247, 0.0
  %v250 = vld [vmem:[%s7] sm:$0xff]
  %v251 = vld [vmem:[%s7 + $0x8] sm:$0xff]
  %v252 = vld [vmem:[%s7 + $0x10] sm:$0xff]
  %v253 = vld [vmem:[%s7 + $0x18] sm:$0xff]
  %vm254 = vcmask 130048
  %v256 = vsel %vm254, %v250, 0
  %v259 = vsel %vm254, %v251, 0
  %v262 = vsel %vm254, %v252, 0
  %v265 = vsel %vm254, %v253, 0
  %267 = vmatpush.msra.mxu0 0.0
  %268 = vmatpush.msra.mxu0 0.0
  %269 = vmatpush.msra.mxu0 0.0
  %270 = vmatpush.msra.mxu0 0.0
  %271 = vmatpush.msra.mxu0 0.0
  %272 = vmatpush.msra.mxu0 0.0
  %273 = vmatpush.msra.mxu0 0.0
  %274 = vmatpush.msra.mxu0 0.0
  %275 = vmatpush.msra.mxu0 0.0
  %276 = vmatpush.msra.mxu0 0.0
  %277 = vmatpush.msra.mxu0 0.0
  %278 = vmatpush.msra.mxu0 0.0
  %279 = vmatpush.msra.mxu0 0.0
  %280 = vmatpush.msra.mxu0 0.0
  %281 = vmatpush.msra.mxu0 %v249
  %282 = vmatpush.msra.mxu0 %v248
  %283 = vmatmul.f32.gmra.mxu0 %v256
  %v284 = vpop.f32.mrf.mxu0
  %v285 = vadd.f32 0.0, %v284
  %286 = vmatmul.f32.gmra.mxu0 %v259
  %v287 = vpop.f32.mrf.mxu0
  %v288 = vadd.f32 0.0, %v287
  %289 = vmatmul.f32.gmra.mxu0 %v262
  %v290 = vpop.f32.mrf.mxu0
  %v291 = vadd.f32 0.0, %v290
  %292 = vmatmul.f32.gmra.mxu0 %v265
  %v293 = vpop.f32.mrf.mxu0
  %v294 = vadd.f32 0.0, %v293
  %295 = vdwg.mxu0
  %296 = vrot.lane.b32.xlu0 %v285, 32
  %v297 = vpop.permute.xlu0 %296
  %v298 = vsel %vm87, %v297, %v285
  %299 = vrot.lane.b32.xlu0 %v288, 32
  %v300 = vpop.permute.xlu0 %299
  %v301 = vsel %vm87, %v300, %v288
  %302 = vrot.lane.b32.xlu0 %v298, 32
  %v303 = vpop.permute.xlu0 %302
  %304 = vrot.lane.b32.xlu0 %v301, 32
  %v305 = vpop.permute.xlu0 %304
  %v306 = vsel %vm87, %v303, %v285
  %v307 = vsel %vm87, %v305, %v288
  %310 = vrot.lane.b32.xlu0 %v306, 98
  %v311 = vpop.permute.xlu0 %310
  %312 = vrot.lane.b32.xlu0 %v307, 98
  %v313 = vpop.permute.xlu0 %312
  %v316 = vsel %vm221, %v311, 0.0
  %v317 = vsel %vm221, %v313, 0.0
  %v318 = vadd.f32 %v291, %v316
  %v319 = vadd.f32 %v294, %v317
  %v320 = vld [vmem:[%s8] sm:$0xff]
  %v321 = vld [vmem:[%s8 + $0x8] sm:$0xff]
  %323 = vset.pattern.permute.xlu0 0
  %324 = vperm.xlu0 %323, %v320
  %v325 = vpop.permute.xlu0 %324
  %328 = vset.pattern.permute.xlu0 0
  %329 = vperm.xlu0 %328, %v321
  %v330 = vpop.permute.xlu0 %329
  %v332 = vadd.f32 %v318, %v325
  %v333 = vadd.f32 %v319, %v330
  %v334 = vmax.f32 %v332, 0.0
  %v335 = vmax.f32 %v333, 0.0
  %v336 = vld [vmem:[%s9] sm:$0xff]
  %v337 = vld [vmem:[%s9 + $0x8] sm:$0xff]
  %v338 = vld [vmem:[%s10] sm:$0xff]
  %v339 = vld [vmem:[%s10 + $0x8] sm:$0xff]
  %341 = vset.pattern.permute.xlu0 0
  %342 = vperm.xlu0 %341, %v338
  %v343 = vpop.permute.xlu0 %342
  %346 = vset.pattern.permute.xlu0 0
  %347 = vperm.xlu0 %346, %v339
  %v348 = vpop.permute.xlu0 %347
  %v351 = vsel %vm57, %v336, 0
  %v354 = vsel %vm57, %v337, 0
  %356 = vmatpush.msra.mxu0 0.0
  %357 = vmatpush.msra.mxu0 0.0
  %358 = vmatpush.msra.mxu0 0.0
  %359 = vmatpush.msra.mxu0 0.0
  %360 = vmatpush.msra.mxu0 0.0
  %361 = vmatpush.msra.mxu0 0.0
  %362 = vmatpush.msra.mxu0 0.0
  %363 = vmatpush.msra.mxu0 0.0
  %364 = vmatpush.msra.mxu0 0.0
  %365 = vmatpush.msra.mxu0 0.0
  %366 = vmatpush.msra.mxu0 0.0
  %367 = vmatpush.msra.mxu0 0.0
  %368 = vmatpush.msra.mxu0 0.0
  %369 = vmatpush.msra.mxu0 0.0
  %370 = vmatpush.msra.mxu0 0.0
  %371 = vmatpush.msra.mxu0 %v162
  %372 = vmatmul.f32.gmra.mxu0 %v351
  %v373 = vpop.f32.mrf.mxu0
  %v374 = vadd.f32 %v343, %v373
  %375 = vmatmul.f32.gmra.mxu0 %v354
  %v376 = vpop.f32.mrf.mxu0
  %v377 = vadd.f32 %v348, %v376
  %378 = vdwg.mxu0
  %v379 = vadd.f32 %v334, %v374
  %v380 = vadd.f32 %v335, %v377
  %v381 = vmax.f32 %v379, 0.0
  %v382 = vmax.f32 %v380, 0.0
  %vm383 = vcmask 261120
  %384 = vst.msk [vmem:[%s11] sm:$0xff] %vm383, %v381
  %385 = vst.msk [vmem:[%s11 + $0x8] sm:$0xff] %vm383, %v382
  // Predicated region
  $region46: #{_lambda_.1} parent=0 // pred_check
    _
  $region47: #{_lambda_.1} parent=0 // pred_check_branch
    %387 = sbr.rel (0) target = $region49
  $region48: #{_lambda_.1} parent=0 // pred_region
    _
  $region49: #{_lambda_.1} parent=0 // pred_fallthru
    _
  // Predicated region
  $region50: #{_lambda_.1} parent=0 // pred_check
    _
  $region51: #{_lambda_.1} parent=0 // pred_check_branch
    %389 = sbr.rel (0) target = $region53
  $region52: #{_lambda_.1} parent=0 // pred_region
    _
  $region53: #{_lambda_.1} parent=0 // pred_fallthru
    _

</llo_original>
